<compile_context>
chip_gen: v7x
topology: tpu7x:2x2x1
jax: 0.10.0
libtpu: 0.0.40
codegen_flags: <defaults>
</compile_context>

<pallas_src>
import functools

import jax
import jax.numpy as jnp
from jax.experimental import pallas as pl
from jax.experimental.pallas import tpu as pltpu


_VMEM_LIMIT_BYTES = 32 * 1024 * 1024  # conservative, portable to v7x (64 MiB phys)


def _cparams():
    return pltpu.CompilerParams(
        dimension_semantics=("parallel",),
        vmem_limit_bytes=_VMEM_LIMIT_BYTES)


# ----------------------------------------------------------------------------
# In-kernel GroupNorm epilogue (two-pass, f32)
# ----------------------------------------------------------------------------
def _gn_epilogue(y, gamma, beta, gmat, gmatt, eps, cnt):
    """y: (M, C) f32 conv output for ONE sample.
    gmat (C, G) / gmatt (G, C): one-hot group membership matrices used to
    reduce per-channel stats to per-group stats and broadcast them back.
    When gmat is None, num_groups == C (per-channel stats, no reduction)."""
    inv_cnt = 1.0 / cnt
    s = jnp.sum(y, axis=0, keepdims=True)                      # (1, C)
    if gmat is None:
        mean_c = s * inv_cnt
    else:
        mean_c = jnp.dot(jnp.dot(s, gmat, preferred_element_type=jnp.float32),
                         gmatt, preferred_element_type=jnp.float32) * inv_cnt
    yc = y - mean_c                                            # centered (two-pass)
    ss = jnp.sum(yc * yc, axis=0, keepdims=True)               # (1, C)
    if gmat is None:
        var_c = ss * inv_cnt
    else:
        var_c = jnp.dot(jnp.dot(ss, gmat, preferred_element_type=jnp.float32),
                        gmatt, preferred_element_type=jnp.float32) * inv_cnt
    inv_c = jax.lax.rsqrt(var_c + eps)
    return yc * (inv_c * gamma) + beta


# ----------------------------------------------------------------------------
# Pallas kernels
# ----------------------------------------------------------------------------
def _conv_gn_kernel(*refs, eps, cnt, relu, add_residual, use_gmat):
    """Fused: (conv as matmul with pre-standardized weight) + GroupNorm
    (+ReLU) (+residual add + ReLU).  One sample per grid step.

    Ref order: a (1, M, K) bf16, w (K, C) bf16, gamma (1, C) f32,
               beta (1, C) f32, [gmat (C, G), gmatt (G, C)],
               [residual (1, M, C) f32], out (1, M, C) f32."""
    a_ref, w_ref, gamma_ref, beta_ref = refs[:4]
    i = 4
    gmat = gmatt = None
    if use_gmat:
        gmat = refs[i][...]
        gmatt = refs[i + 1][...]
        i += 2
    res_ref = None
    if add_residual:
        res_ref = refs[i]
        i += 1
    o_ref = refs[i]

    # MXU matmul, bf16 operands, f32 accumulation.
    y = jnp.dot(a_ref[0], w_ref[...], preferred_element_type=jnp.float32)
    out = _gn_epilogue(y, gamma_ref[...], beta_ref[...], gmat, gmatt, eps, cnt)
    if add_residual:
        out = jnp.maximum(out + res_ref[0], 0.0)
    elif relu:
        out = jnp.maximum(out, 0.0)
    o_ref[0] = out.astype(o_ref.dtype)


def _maxpool_kernel(x_ref, o_ref, *, ksize, stride, ho, wo):
    """3x3 stride-2 (pad 0) max pool, NHWC, one sample per grid step."""
    x = x_ref[...]                                             # (1, H, W, C)
    tmp = jnp.stack(
        [jnp.max(x[:, :, j * stride:j * stride + ksize, :], axis=2)
         for j in range(wo)], axis=2)                          # (1, H, Wo, C)
    out = jnp.stack(
        [jnp.max(tmp[:, i * stride:i * stride + ksize, :, :], axis=1)
         for i in range(ho)], axis=1)                          # (1, Ho, Wo, C)
    o_ref[...] = out


# ----------------------------------------------------------------------------
# Wrappers around pallas_call
# ----------------------------------------------------------------------------
def _group_onehot(c, groups):
    cg = c // groups
    gmat = (jnp.arange(c)[:, None] // cg ==
            jnp.arange(groups)[None, :]).astype(jnp.float32)   # (C, G)
    return gmat, jnp.transpose(gmat)                           # (C, G), (G, C)


def _fused_conv_gn(a, w_mat, gamma, beta, *, groups, eps, relu=False,
                   residual=None):
    """a: (N, M, K) activations.  w_mat: (K, C) standardized conv weight.
    Returns GroupNorm(a @ w)(+relu / +residual+relu) as (N, M, C) f32."""
    n, m, k = a.shape
    c = w_mat.shape[1]
    cnt = float(m * (c // groups))
    use_gmat = (groups != c)

    a = a.astype(jnp.bfloat16)
    w_mat = w_mat.astype(jnp.bfloat16)
    gamma2 = gamma.reshape(1, c).astype(jnp.float32)
    beta2 = beta.reshape(1, c).astype(jnp.float32)

    operands = [a, w_mat, gamma2, beta2]
    in_specs = [
        pl.BlockSpec((1, m, k), lambda i: (i, 0, 0)),
        pl.BlockSpec((k, c), lambda i: (0, 0)),
        pl.BlockSpec((1, c), lambda i: (0, 0)),
        pl.BlockSpec((1, c), lambda i: (0, 0)),
    ]
    if use_gmat:
        gmat, gmatt = _group_onehot(c, groups)
        operands += [gmat, gmatt]
        in_specs += [pl.BlockSpec((c, groups), lambda i: (0, 0)),
                     pl.BlockSpec((groups, c), lambda i: (0, 0))]
    add_residual = residual is not None
    if add_residual:
        operands.append(residual.astype(jnp.float32))
        in_specs.append(pl.BlockSpec((1, m, c), lambda i: (i, 0, 0)))

    kernel = functools.partial(_conv_gn_kernel, eps=eps, cnt=cnt, relu=relu,
                               add_residual=add_residual, use_gmat=use_gmat)
    return pl.pallas_call(
        kernel,
        out_shape=jax.ShapeDtypeStruct((n, m, c), jnp.float32),
        grid=(n,),
        in_specs=in_specs,
        out_specs=pl.BlockSpec((1, m, c), lambda i: (i, 0, 0)),
        compiler_params=_cparams(),
    )(*operands)


def _standardize_weight(w, eps=1e-5):
    """StdConv2d weight standardization: population variance over
    (cin, kh, kw), eps inside the sqrt (matches torch.var_mean unbiased=False).
    Done once per conv in plain JAX (not per grid step)."""
    m = jnp.mean(w, axis=(1, 2, 3), keepdims=True)
    v = jnp.mean(jnp.square(w - m), axis=(1, 2, 3), keepdims=True)
    return (w - m) / jnp.sqrt(v + eps)


def _im2col(x, ksize, stride, pad):
    """x: (N, H, W, C) -> patches (N, Ho, Wo, ksize*ksize*C), ordered (kh,kw,c)."""
    n, h, w, c = x.shape
    if pad > 0:
        x = jnp.pad(x, ((0, 0), (pad, pad), (pad, pad), (0, 0)))
    hp, wp = h + 2 * pad, w + 2 * pad
    ho = (hp - ksize) // stride + 1
    wo = (wp - ksize) // stride + 1
    cols = []
    for kh in range(ksize):
        for kw in range(ksize):
            cols.append(x[:, kh:kh + stride * (ho - 1) + 1:stride,
                          kw:kw + stride * (wo - 1) + 1:stride, :])
    patches = jnp.concatenate(cols, axis=-1)
    return patches, ho, wo


def std_conv_gn(x, w, *, stride, pad, gamma, beta, groups, eps,
                relu=False, residual=None):
    """Fused StdConv2d (bias-free) + GroupNorm (+ReLU) (+residual add + ReLU).
    x: (N, H, W, Cin) NHWC f32.  w: (Cout, Cin, KH, KW) torch layout."""
    cout, cin, kh, kw = w.shape
    w_std = _standardize_weight(w)
    n = x.shape[0]
    if kh == 1 and kw == 1:
        # 1x1 conv: stride == spatial subsampling; no patch expansion at all.
        if stride > 1:
            x = x[:, ::stride, ::stride, :]
        _, ho, wo, _ = x.shape
        a = x.reshape(n, ho * wo, cin)
        w_mat = jnp.transpose(w_std[:, :, 0, 0])                       # (Cin, Cout)
    else:
        # TODO(synk): replace the HBM-materialized im2col for k>1 convs with an
        # in-kernel (kh,kw)-decomposed accumulation to cut activation DMA ~k*k-x.
        patches, ho, wo = _im2col(x, kh, stride, pad)
        a = patches.reshape(n, ho * wo, kh * kw * cin)
        w_mat = jnp.transpose(w_std, (2, 3, 1, 0)).reshape(kh * kw * cin, cout)
    res = None
    if residual is not None:
        res = residual.reshape(n, ho * wo, cout)
    y = _fused_conv_gn(a, w_mat, gamma, beta, groups=groups, eps=eps,
                       relu=relu, residual=res)
    return y.reshape(n, ho, wo, cout)


def max_pool_3x3_s2(x):
    """NHWC max pool, kernel=3, stride=2, padding=0."""
    n, h, w, c = x.shape
    ho = (h - 3) // 2 + 1
    wo = (w - 3) // 2 + 1
    return pl.pallas_call(
        functools.partial(_maxpool_kernel, ksize=3, stride=2, ho=ho, wo=wo),
        out_shape=jax.ShapeDtypeStruct((n, ho, wo, c), jnp.float32),
        grid=(n,),
        in_specs=[pl.BlockSpec((1, h, w, c), lambda i: (i, 0, 0, 0))],
        out_specs=pl.BlockSpec((1, ho, wo, c), lambda i: (i, 0, 0, 0)),
        compiler_params=_cparams(),
    )(x)


# ----------------------------------------------------------------------------
# Model: parameters and forward
# ----------------------------------------------------------------------------
def _init_conv(key, cout, cin, k):
    return jax.random.normal(key, (cout, cin, k, k), dtype=jnp.float32) * 0.05


def build_params(key, block_units=(1, 1, 1), width_factor=0.5):
    width = int(64 * width_factor)
    keys = iter(jax.random.split(key, 256))
    params = {
        "width": width,
        "root": {
            "conv_w": _init_conv(next(keys), width, 3, 7),
            "gn_g": jnp.ones((width,), jnp.float32),
            "gn_b": jnp.zeros((width,), jnp.float32),
        },
    }
    specs = [
        (width, width * 4, width, 1, block_units[0]),
        (width * 4, width * 8, width * 2, 2, block_units[1]),
        (width * 8, width * 16, width * 4, 2, block_units[2]),
    ]
    blocks = []
    for cin0, cout, cmid, stride0, n_units in specs:
        units = []
        for u in range(n_units):
            cin = cin0 if u == 0 else cout
            stride = stride0 if u == 0 else 1
            has_down = (stride != 1) or (cin != cout)
            unit = {
                "stride": stride,
                "cout": cout,
                "has_down": has_down,
                "conv1_w": _init_conv(next(keys), cmid, cin, 1),
                "gn1_g": jnp.ones((cmid,), jnp.float32),
                "gn1_b": jnp.zeros((cmid,), jnp.float32),
                "conv2_w": _init_conv(next(keys), cmid, cmid, 3),
                "gn2_g": jnp.ones((cmid,), jnp.float32),
                "gn2_b": jnp.zeros((cmid,), jnp.float32),
                "conv3_w": _init_conv(next(keys), cout, cmid, 1),
                "gn3_g": jnp.ones((cout,), jnp.float32),
                "gn3_b": jnp.zeros((cout,), jnp.float32),
            }
            if has_down:
                unit["down_w"] = _init_conv(next(keys), cout, cin, 1)
                unit["gnp_g"] = jnp.ones((cout,), jnp.float32)
                unit["gnp_b"] = jnp.zeros((cout,), jnp.float32)
            units.append(unit)
        blocks.append(units)
    params["blocks"] = blocks
    return params


def bottleneck_forward(x, unit):
    """Pre-activation bottleneck (matches PreActBottleneck.forward)."""
    stride = unit["stride"]
    if unit["has_down"]:
        # downsample conv1x1 + gn_proj (GroupNorm(cout, cout), default eps 1e-5)
        residual = std_conv_gn(x, unit["down_w"], stride=stride, pad=0,
                               gamma=unit["gnp_g"], beta=unit["gnp_b"],
                               groups=unit["cout"], eps=1e-5, relu=False)
    else:
        residual = x
    y = std_conv_gn(x, unit["conv1_w"], stride=1, pad=0,
                    gamma=unit["gn1_g"], beta=unit["gn1_b"],
                    groups=32, eps=1e-6, relu=True)
    y = std_conv_gn(y, unit["conv2_w"], stride=stride, pad=1,
                    gamma=unit["gn2_g"], beta=unit["gn2_b"],
                    groups=32, eps=1e-6, relu=True)
    # conv3 + gn3 + residual add + final ReLU fused into one kernel.
    y = std_conv_gn(y, unit["conv3_w"], stride=1, pad=0,
                    gamma=unit["gn3_g"], beta=unit["gn3_b"],
                    groups=32, eps=1e-6, residual=residual)
    return y


def resnet_v2_forward(x_nchw, params):
    """Input: NCHW float32 (B, 3, S, S).  Returns (x, features[::-1]) in NCHW,
    matching the PyTorch ResNetV2.forward."""
    b, _, in_size, _ = x_nchw.shape
    x = jnp.transpose(x_nchw, (0, 2, 3, 1)).astype(jnp.float32)   # -> NHWC

    features = []
    # root: StdConv2d(3, width, k=7, s=2, p=3) + GN(32) + ReLU (fused)
    x = std_conv_gn(x, params["root"]["conv_w"], stride=2, pad=3,
                    gamma=params["root"]["gn_g"], beta=params["root"]["gn_b"],
                    groups=32, eps=1e-6, relu=True)
    features.append(x)

    # MaxPool2d(kernel=3, stride=2, padding=0)
    x = max_pool_3x3_s2(x)

    blocks = params["blocks"]
    for i in range(len(blocks) - 1):
        for unit in blocks[i]:
            x = bottleneck_forward(x, unit)
        right_size = int(in_size / 4 / (i + 1))
        if x.shape[1] != right_size:
            pad_h = right_size - x.shape[1]
            pad_w = right_size - x.shape[2]
            assert 0 < pad_h < 3, "x {} should {}".format(x.shape, right_size)
            feat = jnp.pad(x, ((0, 0), (0, pad_h), (0, pad_w), (0, 0)))
        else:
            feat = x
        features.append(feat)

    for unit in blocks[-1]:
        x = bottleneck_forward(x, unit)

    # back to NCHW for PyTorch-identical axis conventions
    x_out = jnp.transpose(x, (0, 3, 1, 2))
    feats = [jnp.transpose(f, (0, 3, 1, 2)) for f in features[::-1]]
    return x_out, feats


if __name__ == "__main__":
    key = jax.random.PRNGKey(0)
    pkey, xkey = jax.random.split(key)

    # block_units=(1,1,1), width_factor=0.5 -> width=32 (GroupNorm(32,.) valid)
    params = build_params(pkey, block_units=(1, 1, 1), width_factor=0.5)
    x = jax.random.normal(xkey, (2, 3, 32, 32), dtype=jnp.float32)

    out, feats = resnet_v2_forward(x, params)
    out = jax.block_until_ready(out)
    feats = [jax.block_until_ready(f) for f in feats]

    # shape checks mirroring the PyTorch module with this config
    assert out.shape == (2, 512, 2, 2), out.shape
    assert feats[0].shape == (2, 256, 4, 4), feats[0].shape
    assert feats[1].shape == (2, 128, 8, 8), feats[1].shape      # zero-padded 7->8
    assert feats[2].shape == (2, 32, 16, 16), feats[2].shape     # root output
    assert bool(jnp.isfinite(out).all())
    assert all(bool(jnp.isfinite(f).all()) for f in feats)

    print("KERNEL_OK")
</pallas_src>

<mosaic_0001>
module attributes {stable_mosaic.version = 11 : i64} {
  func.func @_conv_gn_kernel(%arg0: i32, %arg1: memref<1x256x147xbf16, #tpu.memory_space<vmem>>, %arg2: memref<147x32xbf16, #tpu.memory_space<vmem>>, %arg3: memref<1x32xf32, #tpu.memory_space<vmem>>, %arg4: memref<1x32xf32, #tpu.memory_space<vmem>>, %arg5: memref<1x256x32xf32, #tpu.memory_space<vmem>>) attributes {dimension_semantics = [#tpu.dimension_semantics<parallel>], iteration_bounds = array<i64: 2>, scalar_prefetch = 0 : i64, scratch_operands = 0 : i64, tpu.core_type = #tpu.core_type<tc>, window_params = [{transform_indices = @transform_0, window_bounds = array<i64: 1, 256, 147>}, {pipeline_mode = #tpu.pipeline_mode<synchronous>, transform_indices = @transform_1, window_bounds = array<i64: 147, 32>}, {pipeline_mode = #tpu.pipeline_mode<synchronous>, transform_indices = @transform_2, window_bounds = array<i64: 1, 32>}, {pipeline_mode = #tpu.pipeline_mode<synchronous>, transform_indices = @transform_3, window_bounds = array<i64: 1, 32>}, {transform_indices = @transform_4, window_bounds = array<i64: 1, 256, 32>}]} {
    %c0 = arith.constant 0 : index
    %c0_0 = arith.constant 0 : index
    %c0_1 = arith.constant 0 : index
    %0 = vector.load %arg1[%c0, %c0_0, %c0_1] : memref<1x256x147xbf16, #tpu.memory_space<vmem>>, vector<1x256x147xbf16>
    %1 = vector.shape_cast %0 : vector<1x256x147xbf16> to vector<256x147xbf16>
    %c0_2 = arith.constant 0 : index
    %c0_3 = arith.constant 0 : index
    %2 = vector.load %arg2[%c0_2, %c0_3] : memref<147x32xbf16, #tpu.memory_space<vmem>>, vector<147x32xbf16>
    %cst = arith.constant dense<0.000000e+00> : vector<256x32xf32>
    %3 = tpu.matmul %1, %2, %cst {dimension_numbers = #tpu.dot_dimension_numbers<[1], [0], [0], [1], [0, 0, 1, 1], [], []>} : vector<256x147xbf16>, vector<147x32xbf16>, vector<256x32xf32> -> vector<256x32xf32>
    %c0_4 = arith.constant 0 : index
    %c0_5 = arith.constant 0 : index
    %4 = vector.load %arg3[%c0_4, %c0_5] : memref<1x32xf32, #tpu.memory_space<vmem>>, vector<1x32xf32>
    %c0_6 = arith.constant 0 : index
    %c0_7 = arith.constant 0 : index
    %5 = vector.load %arg4[%c0_6, %c0_7] : memref<1x32xf32, #tpu.memory_space<vmem>>, vector<1x32xf32>
    %cst_8 = arith.constant dense<0.000000e+00> : vector<32xf32>
    %6 = vector.multi_reduction <add>, %3, %cst_8 [0] : vector<256x32xf32> to vector<32xf32>
    %7 = vector.shape_cast %6 : vector<32xf32> to vector<1x32xf32>
    %cst_9 = arith.constant 3.906250e-03 : f32
    %8 = vector.broadcast %cst_9 : f32 to vector<1x32xf32>
    %9 = arith.mulf %7, %8 : vector<1x32xf32>
    %10 = vector.broadcast %9 : vector<1x32xf32> to vector<256x32xf32>
    %11 = arith.subf %3, %10 : vector<256x32xf32>
    %12 = arith.mulf %11, %11 : vector<256x32xf32>
    %cst_10 = arith.constant dense<0.000000e+00> : vector<32xf32>
    %13 = vector.multi_reduction <add>, %12, %cst_10 [0] : vector<256x32xf32> to vector<32xf32>
    %14 = vector.shape_cast %13 : vector<32xf32> to vector<1x32xf32>
    %cst_11 = arith.constant 3.906250e-03 : f32
    %15 = vector.broadcast %cst_11 : f32 to vector<1x32xf32>
    %16 = arith.mulf %14, %15 : vector<1x32xf32>
    %cst_12 = arith.constant 9.99999997E-7 : f32
    %17 = vector.broadcast %cst_12 : f32 to vector<1x32xf32>
    %18 = arith.addf %16, %17 : vector<1x32xf32>
    %19 = math.rsqrt %18 : vector<1x32xf32>
    %20 = arith.mulf %19, %4 : vector<1x32xf32>
    %21 = vector.broadcast %20 : vector<1x32xf32> to vector<256x32xf32>
    %22 = arith.mulf %11, %21 : vector<256x32xf32>
    %23 = vector.broadcast %5 : vector<1x32xf32> to vector<256x32xf32>
    %24 = arith.addf %22, %23 : vector<256x32xf32>
    %cst_13 = arith.constant 0.000000e+00 : f32
    %25 = vector.broadcast %cst_13 : f32 to vector<256x32xf32>
    %26 = arith.maximumf %24, %25 : vector<256x32xf32>
    %c0_14 = arith.constant 0 : index
    %c0_15 = arith.constant 0 : index
    %c0_16 = arith.constant 0 : index
    %27 = vector.load %arg5[%c0_14, %c0_15, %c0_16] : memref<1x256x32xf32, #tpu.memory_space<vmem>>, vector<1x256x32xf32>
    %28 = vector.shape_cast %27 : vector<1x256x32xf32> to vector<256x32xf32>
    %29 = vector.shape_cast %26 : vector<256x32xf32> to vector<1x256x32xf32>
    tpu.vector_store %arg5[%c0_14, %c0_15, %c0_16], %29 {strides = array<i32>} : memref<1x256x32xf32, #tpu.memory_space<vmem>>, vector<1x256x32xf32>,
    return
  }
  func.func @transform_0(%arg0: i32) -> (i32, i32, i32) {
    %c0_i32 = arith.constant 0 : i32
    %c0_i32_0 = arith.constant 0 : i32
    %c0_i32_1 = arith.constant 0 : i32
    return %arg0, %c0_i32, %c0_i32_0 : i32, i32, i32
  }
  func.func @transform_1(%arg0: i32) -> (i32, i32) {
    %c0_i32 = arith.constant 0 : i32
    %c0_i32_0 = arith.constant 0 : i32
    %c0_i32_1 = arith.constant 0 : i32
    return %c0_i32, %c0_i32_0 : i32, i32
  }
  func.func @transform_2(%arg0: i32) -> (i32, i32) {
    %c0_i32 = arith.constant 0 : i32
    %c0_i32_0 = arith.constant 0 : i32
    %c0_i32_1 = arith.constant 0 : i32
    return %c0_i32, %c0_i32_0 : i32, i32
  }
  func.func @transform_3(%arg0: i32) -> (i32, i32) {
    %c0_i32 = arith.constant 0 : i32
    %c0_i32_0 = arith.constant 0 : i32
    %c0_i32_1 = arith.constant 0 : i32
    return %c0_i32, %c0_i32_0 : i32, i32
  }
  func.func @transform_4(%arg0: i32) -> (i32, i32, i32) {
    %c0_i32 = arith.constant 0 : i32
    %c0_i32_0 = arith.constant 0 : i32
    %c0_i32_1 = arith.constant 0 : i32
    return %arg0, %c0_i32, %c0_i32_0 : i32, i32, i32
  }
}

</mosaic_0001>

<llo_original>
// kernel: tpu_custom_call.1
$region0: #{tpu_custom_call.1}
  #allocation0 [shape = 'u32[]', space=smem, size = 0x4, offset = 0x4, fixed_abs, tag = 'smem constant byte address 0x4 - core index']
  #allocation1 [shape = 'u32[144,128]{1,0:T(1,128)}', space=vmem, size = 0x12000, scoped, tag = 'internal scratch']
  %s0 = inlined_call_operand.vmem [shape: bf16[2,256,147], index: 0, kind: input, shape index: {}]
  %s1 = inlined_call_operand.vmem [shape: bf16[147,32], index: 1, kind: input, shape index: {}]
  %s2 = inlined_call_operand.vmem [shape: f32[1,32], index: 2, kind: input, shape index: {}]
  %s3 = inlined_call_operand.vmem [shape: f32[1,32], index: 3, kind: input, shape index: {}]
  %s4 = inlined_call_operand.vmem [shape: f32[2,256,32], index: 4, kind: output, shape index: {}]
  %s5 = sld [smem:[#allocation0]]
  $region49: #{tpu_custom_call.1} parent=0
    _
  %s7 = ssub.s32 1, %s5
  %s8 = scalar_select 0, %s7, %s5
  loop: start=0, step=1, limit=4
  $region2: #{tpu_custom_call.1} parent=0 // loop_pre_header
    _
  $region3: #{tpu_custom_call.1} parent=0 // loop_header
    %s10 = sphi 0, %s14
    %p11 = scmp.ge.s32.totalorder %s10, 4
    %s20 = sphi 0, %s22
    %s23 = sphi 0, %s20
    %s24 = sphi 0, %s23
    %s40 = sphi 0, %s24
    %s44 = sphi 0, %s44
    %s46 = sphi 0, %s44
    %s47 = sphi 0, %s46
    %s61 = sphi 0, %s47
    %s65 = sphi 0, %s65
    %s67 = sphi 0, %s65
    %s68 = sphi 0, %s67
    %s82 = sphi 0, %s68
    %s86 = sphi 0, %s86
    %s88 = sphi 0, %s86
    %s89 = sphi 0, %s88
    %s103 = sphi 0, %s89
    %s109 = sphi 0, %s111
    %s112 = sphi 0, %s109
    %s113 = sphi 0, %s112
    %s129 = sphi 0, %s113
  $region4: #{tpu_custom_call.1} parent=0 // loop_header_branch
    %13 = sbr.rel (%p11) target = $region8
  $region5: #{tpu_custom_call.1} parent=0 // loop_body
    %s15 = ssub.s32 %s10, 1
    %s16 = ssub.s32 %s10, 2
    %s17 = sadd.s32 %s10, 1
    %s18 = ssub.s32 %s10, %s17
    %p19 = scmp.eq.s32.totalorder %s18, 0
    %s21 = sadd.s32 %s20, 1
    %s22 = scalar_select %p19, %s20, %s21
    %p25 = pneg %p19
    %p26 = scmp.eq.s32.totalorder %s10, 1
    %p27 = por %p25, %p26
    %p28 = scmp.ne.s32.totalorder %s20, %s23
    %p29 = scmp.eq.s32.totalorder %s10, 0
    %p30 = por %p28, %p29
    %p31 = scmp.ne.s32.totalorder %s20, %s23
    %p32 = scmp.eq.s32.totalorder %s15, 1
    %p33 = por %p31, %p32
    %p34 = scmp.ne.s32.totalorder %s23, %s24
    %p35 = scmp.eq.s32.totalorder %s15, 0
    %p36 = por %p34, %p35
    %p37 = scmp.ne.s32.totalorder %s23, %s24
    %p38 = scmp.eq.s32.totalorder %s16, 1
    %p39 = por %p37, %p38
    %p41 = scmp.ne.s32.totalorder %s24, %s40
    %p42 = scmp.eq.s32.totalorder %s16, 0
    %p43 = por %p41, %p42
    %s45 = sadd.s32 %s44, 1
    %p48 = scmp.eq.s32.totalorder %s10, 1
    %p49 = scmp.ne.s32.totalorder %s44, %s46
    %p50 = scmp.eq.s32.totalorder %s10, 0
    %p51 = por %p49, %p50
    %p52 = scmp.ne.s32.totalorder %s44, %s46
    %p53 = scmp.eq.s32.totalorder %s15, 1
    %p54 = por %p52, %p53
    %p55 = scmp.ne.s32.totalorder %s46, %s47
    %p56 = scmp.eq.s32.totalorder %s15, 0
    %p57 = por %p55, %p56
    %p58 = scmp.ne.s32.totalorder %s46, %s47
    %p59 = scmp.eq.s32.totalorder %s16, 1
    %p60 = por %p58, %p59
    %p62 = scmp.ne.s32.totalorder %s47, %s61
    %p63 = scmp.eq.s32.totalorder %s16, 0
    %p64 = por %p62, %p63
    %s66 = sadd.s32 %s65, 1
    %p69 = scmp.eq.s32.totalorder %s10, 1
    %p70 = scmp.ne.s32.totalorder %s65, %s67
    %p71 = scmp.eq.s32.totalorder %s10, 0
    %p72 = por %p70, %p71
    %p73 = scmp.ne.s32.totalorder %s65, %s67
    %p74 = scmp.eq.s32.totalorder %s15, 1
    %p75 = por %p73, %p74
    %p76 = scmp.ne.s32.totalorder %s67, %s68
    %p77 = scmp.eq.s32.totalorder %s15, 0
    %p78 = por %p76, %p77
    %p79 = scmp.ne.s32.totalorder %s67, %s68
    %p80 = scmp.eq.s32.totalorder %s16, 1
    %p81 = por %p79, %p80
    %p83 = scmp.ne.s32.totalorder %s68, %s82
    %p84 = scmp.eq.s32.totalorder %s16, 0
    %p85 = por %p83, %p84
    %s87 = sadd.s32 %s86, 1
    %p90 = scmp.eq.s32.totalorder %s10, 1
    %p91 = scmp.ne.s32.totalorder %s86, %s88
    %p92 = scmp.eq.s32.totalorder %s10, 0
    %p93 = por %p91, %p92
    %p94 = scmp.ne.s32.totalorder %s86, %s88
    %p95 = scmp.eq.s32.totalorder %s15, 1
    %p96 = por %p94, %p95
    %p97 = scmp.ne.s32.totalorder %s88, %s89
    %p98 = scmp.eq.s32.totalorder %s15, 0
    %p99 = por %p97, %p98
    %p100 = scmp.ne.s32.totalorder %s88, %s89
    %p101 = scmp.eq.s32.totalorder %s16, 1
    %p102 = por %p100, %p101
    %p104 = scmp.ne.s32.totalorder %s89, %s103
    %p105 = scmp.eq.s32.totalorder %s16, 0
    %p106 = por %p104, %p105
    %s107 = ssub.s32 %s10, %s17
    %p108 = scmp.eq.s32.totalorder %s107, 0
    %s110 = sadd.s32 %s109, 1
    %s111 = scalar_select %p108, %s109, %s110
    %p114 = pneg %p108
    %p115 = scmp.eq.s32.totalorder %s10, 1
    %p116 = por %p114, %p115
    %p117 = scmp.ne.s32.totalorder %s109, %s112
    %p118 = scmp.eq.s32.totalorder %s10, 0
    %p119 = por %p117, %p118
    %p120 = scmp.ne.s32.totalorder %s109, %s112
    %p121 = scmp.eq.s32.totalorder %s15, 1
    %p122 = por %p120, %p121
    %p123 = scmp.ne.s32.totalorder %s112, %s113
    %p124 = scmp.eq.s32.totalorder %s15, 0
    %p125 = por %p123, %p124
    %p126 = scmp.ne.s32.totalorder %s112, %s113
    %p127 = scmp.eq.s32.totalorder %s16, 1
    %p128 = por %p126, %p127
    %p130 = scmp.ne.s32.totalorder %s113, %s129
    %p131 = scmp.eq.s32.totalorder %s16, 0
    %p132 = por %p130, %p131
    %p133 = scmp.le.s32.totalorder 1, %s10
    %p134 = scmp.lt.s32.totalorder %s10, 3
    %p135 = pnand %p133, %p134
    %p136 = pneg %p135
    // Predicated region
    $region9: #{tpu_custom_call.1} parent=5 // pred_check
      _
    $region10: #{tpu_custom_call.1} parent=5 // pred_check_branch
      %138 = sbr.rel (%p135) target = $region12
    $region11: #{tpu_custom_call.1} parent=5 // pred_region
      %s139 = ssub.s32 %s10, 1
      // Predicated region
      $region13: #{tpu_custom_call.1} parent=11 // pred_check
        %p140 = pneg %p57
      $region14: #{tpu_custom_call.1} parent=11 // pred_check_branch
        %142 = sbr.rel (%p140) target = $region16
      $region15: #{tpu_custom_call.1} parent=11 // pred_region
        _
      $region16: #{tpu_custom_call.1} parent=11 // pred_fallthru
        _
      // Predicated region
      $region17: #{tpu_custom_call.1} parent=11 // pred_check
        %p143 = pneg %p78
      $region18: #{tpu_custom_call.1} parent=11 // pred_check_branch
        %145 = sbr.rel (%p143) target = $region20
      $region19: #{tpu_custom_call.1} parent=11 // pred_region
        _
      $region20: #{tpu_custom_call.1} parent=11 // pred_fallthru
        _
      // Predicated region
      $region21: #{tpu_custom_call.1} parent=11 // pred_check
        %p146 = pneg %p99
      $region22: #{tpu_custom_call.1} parent=11 // pred_check_branch
        %148 = sbr.rel (%p146) target = $region24
      $region23: #{tpu_custom_call.1} parent=11 // pred_region
        _
      $region24: #{tpu_custom_call.1} parent=11 // pred_fallthru
        _
    $region12: #{tpu_custom_call.1} parent=5 // pred_fallthru
      _
    %p149 = scmp.lt.s32.totalorder %s10, 2
    // Predicated region
    $region25: #{tpu_custom_call.1} parent=5 // pred_check
      %p150 = pneg %p149
    $region26: #{tpu_custom_call.1} parent=5 // pred_check_branch
      %152 = sbr.rel (%p150) target = $region28
    $region27: #{tpu_custom_call.1} parent=5 // pred_region
      // Predicated region
      $region29: #{tpu_custom_call.1} parent=27 // pred_check
        %p153 = pneg %p30
      $region30: #{tpu_custom_call.1} parent=27 // pred_check_branch
        %155 = sbr.rel (%p153) target = $region32
      $region31: #{tpu_custom_call.1} parent=27 // pred_region
        %p156 = scmp.lt.s32.totalorder %s10, 1
        %s157 = scalar_select %p156, %s10, 1
        %s158 = smul.addr %s157, 64
        %s159 = smul.addr %s158, 4
        %s160 = scalar_lea.vmem %s0, %s159
      $region32: #{tpu_custom_call.1} parent=27 // pred_fallthru
        _
    $region28: #{tpu_custom_call.1} parent=5 // pred_fallthru
      _
    %p161 = scmp.le.s32.totalorder 1, %s10
    %p162 = scmp.lt.s32.totalorder %s10, 3
    %p163 = pnand %p161, %p162
    %p164 = pneg %p163
    // Predicated region
    $region33: #{tpu_custom_call.1} parent=5 // pred_check
      _
    $region34: #{tpu_custom_call.1} parent=5 // pred_check_branch
      %166 = sbr.rel (%p163) target = $region36
    $region35: #{tpu_custom_call.1} parent=5 // pred_region
      %s167 = ssub.s32 %s10, 1
      %p168 = scmp.lt.s32.totalorder %s15, 1
      %s169 = scalar_select %p168, %s15, 1
      %s170 = smul.addr %s169, 64
      %s171 = smul.addr %s170, 4
      %s172 = scalar_lea.vmem %s0, %s171
      %p173 = pneg %p36
      %p174 = pneg %p33
      %p175 = pneg %p57
      %p176 = pneg %p54
      %p177 = pneg %p78
      %p178 = pneg %p75
      %p179 = pneg %p99
      %p180 = pneg %p96
      %p181 = pneg %p125
      %p182 = pneg %p122
      %p183 = scmp.lt.s32.totalorder %s15, 1
      %s184 = scalar_select %p183, %s15, 1
      %s185 = smul.addr %s184, 32
      %s186 = smul.addr %s185, 8
      %s187 = scalar_lea.vmem %s4, %s186
      %p188 = scmp.lt.s32.totalorder %s15, 1
      %s189 = scalar_select %p188, %s15, 1
      %s190 = smul.addr %s189, 64
      %s191 = smul.addr %s190, 4
      %s192 = scalar_lea.vmem %s0, %s191
      %p193 = scmp.lt.s32.totalorder %s15, 1
      %s194 = scalar_select %p193, %s15, 1
      %s195 = smul.addr %s194, 32
      %s196 = smul.addr %s195, 8
      %s197 = scalar_lea.vmem %s4, %s196
      %v199 = vld [vmem:[%s192] sm:$0xff]
      %v200 = vld [vmem:[%s192 + $0x8] sm:$0xff]
      %v201 = vld [vmem:[%s192 + $0x10] sm:$0xff]
      %v202 = vld [vmem:[%s192 + $0x18] sm:$0xff]
      %v203 = vld [vmem:[%s192 + $0x20] sm:$0xff]
      %v204 = vld [vmem:[%s192 + $0x28] sm:$0xff]
      %v205 = vld [vmem:[%s192 + $0x30] sm:$0xff]
      %v206 = vld [vmem:[%s192 + $0x38] sm:$0xff]
      %v207 = vld [vmem:[%s192 + $0x40] sm:$0xff]
      %v208 = vld [vmem:[%s192 + $0x48] sm:$0xff]
      %v209 = vld [vmem:[%s192 + $0x50] sm:$0xff]
      %v210 = vld [vmem:[%s192 + $0x58] sm:$0xff]
      %v211 = vld [vmem:[%s192 + $0x60] sm:$0xff]
      %v212 = vld [vmem:[%s192 + $0x68] sm:$0xff]
      %v213 = vld [vmem:[%s192 + $0x70] sm:$0xff]
      %v214 = vld [vmem:[%s192 + $0x78] sm:$0xff]
      %v215 = vld [vmem:[%s192 + $0x80] sm:$0xff]
      %v216 = vld [vmem:[%s192 + $0x88] sm:$0xff]
      %v217 = vld [vmem:[%s192 + $0x90] sm:$0xff]
      %v218 = vld [vmem:[%s192 + $0x98] sm:$0xff]
      %v219 = vld [vmem:[%s192 + $0xa0] sm:$0xff]
      %v220 = vld [vmem:[%s192 + $0xa8] sm:$0xff]
      %v221 = vld [vmem:[%s192 + $0xb0] sm:$0xff]
      %v222 = vld [vmem:[%s192 + $0xb8] sm:$0xff]
      %v223 = vld [vmem:[%s192 + $0xc0] sm:$0xff]
      %v224 = vld [vmem:[%s192 + $0xc8] sm:$0xff]
      %v225 = vld [vmem:[%s192 + $0xd0] sm:$0xff]
      %v226 = vld [vmem:[%s192 + $0xd8] sm:$0xff]
      %v227 = vld [vmem:[%s192 + $0xe0] sm:$0xff]
      %v228 = vld [vmem:[%s192 + $0xe8] sm:$0xff]
      %v229 = vld [vmem:[%s192 + $0xf0] sm:$0xff]
      %v230 = vld [vmem:[%s192 + $0xf8] sm:$0xff]
      %v231 = vld [vmem:[%s1] sm:$0xf]
      %v232 = vld [vmem:[%s1 + $0x4] sm:$0xf]
      %v233 = vld [vmem:[%s1 + $0x8] sm:$0xf]
      %v234 = vld [vmem:[%s1 + $0xc] sm:$0xf]
      %v235 = vld [vmem:[%s1 + $0x10] sm:$0xf]
      %v236 = vld [vmem:[%s1 + $0x14] sm:$0xf]
      %v237 = vld [vmem:[%s1 + $0x18] sm:$0xf]
      %v238 = vld [vmem:[%s1 + $0x1c] sm:$0xf]
      %v239 = vld [vmem:[%s1 + $0x20] sm:$0xf]
      %v240 = vld [vmem:[%s1 + $0x24] sm:$0xf]
      %v241 = vld [vmem:[%s1 + $0x28] sm:$0xf]
      %v242 = vld [vmem:[%s1 + $0x2c] sm:$0xf]
      %v243 = vld [vmem:[%s1 + $0x30] sm:$0xf]
      %v244 = vld [vmem:[%s1 + $0x34] sm:$0xf]
      %v245 = vld [vmem:[%s1 + $0x38] sm:$0xf]
      %v246 = vld [vmem:[%s1 + $0x3c] sm:$0xf]
      %v247 = vld [vmem:[%s1 + $0x40] sm:$0xf]
      %v248 = vld [vmem:[%s1 + $0x44] sm:$0xf]
      %v249 = vld [vmem:[%s1 + $0x48] sm:$0x3]
      %v282 = vunpack.c.l.b16 %v199
      %v283 = vunpack.c.h.b16 %v199
      %v284 = vunpack.c.l.b16 %v200
      %v285 = vunpack.c.h.b16 %v200
      %v286 = vunpack.c.l.b16 %v201
      %v287 = vunpack.c.h.b16 %v201
      %v288 = vunpack.c.l.b16 %v202
      %v289 = vunpack.c.h.b16 %v202
      %v290 = vunpack.c.l.b16 %v203
      %v291 = vunpack.c.h.b16 %v203
      %v292 = vunpack.c.l.b16 %v204
      %v293 = vunpack.c.h.b16 %v204
      %v294 = vunpack.c.l.b16 %v205
      %v295 = vunpack.c.h.b16 %v205
      %v296 = vunpack.c.l.b16 %v206
      %v297 = vunpack.c.h.b16 %v206
      %v298 = vunpack.c.l.b16 %v207
      %v299 = vunpack.c.h.b16 %v207
      %v300 = vunpack.c.l.b16 %v208
      %v301 = vunpack.c.h.b16 %v208
      %v302 = vunpack.c.l.b16 %v209
      %v303 = vunpack.c.h.b16 %v209
      %v304 = vunpack.c.l.b16 %v210
      %v305 = vunpack.c.h.b16 %v210
      %v306 = vunpack.c.l.b16 %v211
      %v307 = vunpack.c.h.b16 %v211
      %v308 = vunpack.c.l.b16 %v212
      %v309 = vunpack.c.h.b16 %v212
      %v310 = vunpack.c.l.b16 %v213
      %v311 = vunpack.c.h.b16 %v213
      %v312 = vunpack.c.l.b16 %v214
      %v313 = vunpack.c.h.b16 %v214
      %v314 = vunpack.c.l.b16 %v215
      %v315 = vunpack.c.h.b16 %v215
      %v316 = vunpack.c.l.b16 %v216
      %v317 = vunpack.c.h.b16 %v216
      %v318 = vunpack.c.l.b16 %v217
      %v319 = vunpack.c.h.b16 %v217
      %v320 = vunpack.c.l.b16 %v218
      %v321 = vunpack.c.h.b16 %v218
      %v322 = vunpack.c.l.b16 %v219
      %v323 = vunpack.c.h.b16 %v219
      %v324 = vunpack.c.l.b16 %v220
      %v325 = vunpack.c.h.b16 %v220
      %v326 = vunpack.c.l.b16 %v221
      %v327 = vunpack.c.h.b16 %v221
      %v328 = vunpack.c.l.b16 %v222
      %v329 = vunpack.c.h.b16 %v222
      %v330 = vunpack.c.l.b16 %v223
      %v331 = vunpack.c.h.b16 %v223
      %v332 = vunpack.c.l.b16 %v224
      %v333 = vunpack.c.h.b16 %v224
      %v334 = vunpack.c.l.b16 %v225
      %v335 = vunpack.c.h.b16 %v225
      %v336 = vunpack.c.l.b16 %v226
      %v337 = vunpack.c.h.b16 %v226
      %v338 = vunpack.c.l.b16 %v227
      %v339 = vunpack.c.h.b16 %v227
      %v340 = vunpack.c.l.b16 %v228
      %v341 = vunpack.c.h.b16 %v228
      %v342 = vunpack.c.l.b16 %v229
      %v343 = vunpack.c.h.b16 %v229
      %v344 = vunpack.c.l.b16 %v230
      %v345 = vunpack.c.h.b16 %v230
      %v346 = vpack.c.b16 %v284, %v282
      %v347 = vpack.c.b16 %v285, %v283
      %v348 = vpack.c.b16 %v288, %v286
      %v349 = vpack.c.b16 %v289, %v287
      %v350 = vpack.c.b16 %v292, %v290
      %v351 = vpack.c.b16 %v293, %v291
      %v352 = vpack.c.b16 %v296, %v294
      %v353 = vpack.c.b16 %v297, %v295
      %v354 = vpack.c.b16 %v300, %v298
      %v355 = vpack.c.b16 %v301, %v299
      %v356 = vpack.c.b16 %v304, %v302
      %v357 = vpack.c.b16 %v305, %v303
      %v358 = vpack.c.b16 %v308, %v306
      %v359 = vpack.c.b16 %v309, %v307
      %v360 = vpack.c.b16 %v312, %v310
      %v361 = vpack.c.b16 %v313, %v311
      %v362 = vpack.c.b16 %v316, %v314
      %v363 = vpack.c.b16 %v317, %v315
      %v364 = vpack.c.b16 %v320, %v318
      %v365 = vpack.c.b16 %v321, %v319
      %v366 = vpack.c.b16 %v324, %v322
      %v367 = vpack.c.b16 %v325, %v323
      %v368 = vpack.c.b16 %v328, %v326
      %v369 = vpack.c.b16 %v329, %v327
      %v370 = vpack.c.b16 %v332, %v330
      %v371 = vpack.c.b16 %v333, %v331
      %v372 = vpack.c.b16 %v336, %v334
      %v373 = vpack.c.b16 %v337, %v335
      %v374 = vpack.c.b16 %v340, %v338
      %v375 = vpack.c.b16 %v341, %v339
      %v376 = vpack.c.b16 %v344, %v342
      %v377 = vpack.c.b16 %v345, %v343
      %v413 = vunpack.c.l.b16 %v231
      %v414 = vunpack.c.l.b16 %v232
      %v415 = vunpack.c.l.b16 %v233
      %v416 = vunpack.c.l.b16 %v234
      %v417 = vunpack.c.l.b16 %v235
      %v418 = vunpack.c.l.b16 %v236
      %v419 = vunpack.c.l.b16 %v237
      %v420 = vunpack.c.l.b16 %v238
      %v421 = vunpack.c.l.b16 %v239
      %v422 = vunpack.c.l.b16 %v240
      %v423 = vunpack.c.l.b16 %v241
      %v424 = vunpack.c.l.b16 %v242
      %v425 = vunpack.c.l.b16 %v243
      %v426 = vunpack.c.l.b16 %v244
      %v427 = vunpack.c.l.b16 %v245
      %v428 = vunpack.c.l.b16 %v246
      %v429 = vunpack.c.l.b16 %v247
      %v430 = vunpack.c.l.b16 %v248
      %v431 = vunpack.c.l.b16 %v249
      %v432 = vpack.c.b16 %v414, %v413
      %v433 = vpack.c.b16 %v416, %v415
      %v434 = vpack.c.b16 %v418, %v417
      %v435 = vpack.c.b16 %v420, %v419
      %v436 = vpack.c.b16 %v422, %v421
      %v437 = vpack.c.b16 %v424, %v423
      %v438 = vpack.c.b16 %v426, %v425
      %v439 = vpack.c.b16 %v428, %v427
      %v440 = vpack.c.b16 %v430, %v429
      %v441 = vpack.c.b16 %v431, %v431
      %vm451 = vcmask 154624
      %v453 = vsel %vm451, %v347, 0
      %v456 = vsel %vm451, %v349, 0
      %v459 = vsel %vm451, %v351, 0
      %v462 = vsel %vm451, %v353, 0
      %v465 = vsel %vm451, %v355, 0
      %v468 = vsel %vm451, %v357, 0
      %v471 = vsel %vm451, %v359, 0
      %v474 = vsel %vm451, %v361, 0
      %v477 = vsel %vm451, %v363, 0
      %v480 = vsel %vm451, %v365, 0
      %v483 = vsel %vm451, %v367, 0
      %v486 = vsel %vm451, %v369, 0
      %v489 = vsel %vm451, %v371, 0
      %v492 = vsel %vm451, %v373, 0
      %v495 = vsel %vm451, %v375, 0
      %v498 = vsel %vm451, %v377, 0
      %vm500 = vcmask 1040384
      %vm501 = vcmask 1041408
      %v502 = vsel %vm500, 4294967295, 65535
      %v503 = vsel %vm501, %v502, 0
      %v505 = vand.u32 %v441, %v503
      %507 = vmatprep.subr.bf16.mxu0 0
      %508 = vmatpush1.bf16.msra.mxu0 %v432
      %509 = vmatprep.subr.bf16.mxu0 0
      %510 = vmatpush1.bf16.msra.mxu0 %v433
      %511 = vmatprep.subr.bf16.mxu0 0
      %512 = vmatpush1.bf16.msra.mxu0 %v434
      %513 = vmatprep.subr.bf16.mxu0 0
      %514 = vmatpush1.bf16.msra.mxu0 %v435
      %515 = vmatprep.subr.bf16.mxu0 0
      %516 = vmatpush1.bf16.msra.mxu0 %v436
      %517 = vmatprep.subr.bf16.mxu0 0
      %518 = vmatpush1.bf16.msra.mxu0 %v437
      %519 = vmatprep.subr.bf16.mxu0 0
      %520 = vmatpush1.bf16.msra.mxu0 %v438
      %521 = vmatprep.subr.bf16.mxu0 0
      %522 = vmatpush1.bf16.msra.mxu0 %v439
      %523 = vmatprep.subr.bf16.mxu0 0
      %524 = vmatpush1.bf16.msra.mxu0 %v440
      %525 = vmatprep.subr.bf16.mxu0 0
      %526 = vmatpush1.bf16.msra.mxu0 %v505
      %527 = vmatprep.subr.bf16.mxu0 0
      %528 = vmatpush1.bf16.msra.mxu0 0
      %529 = vmatprep.subr.bf16.mxu0 0
      %530 = vmatpush1.bf16.msra.mxu0 0
      %531 = vmatprep.subr.bf16.mxu0 0
      %532 = vmatpush1.bf16.msra.mxu0 0
      %533 = vmatprep.subr.bf16.mxu0 0
      %534 = vmatpush1.bf16.msra.mxu0 0
      %535 = vmatprep.subr.bf16.mxu0 0
      %536 = vmatpush1.bf16.msra.mxu0 0
      %537 = vmatprep.subr.bf16.mxu0 0
      %538 = vmatpush1.bf16.msra.mxu0 0
      %539 = vmatprep.mubr.bf16.mxu0 %v453
      %540 = vmatmul.mubr.bf16.gmra.mrb[0].mxu0 %v346
      %v541 = vpop.f32.mrb[0].mxu0
      %v542 = vadd.f32 0.0, %v541
      %v543 = vpop.f32.mrb[0].mxu0
      %v544 = vpop.f32.mrb[0].mxu0
      %v545 = vadd.f32 0.0, %v544
      %v546 = vpop.f32.mrb[0].mxu0
      %547 = vmatprep.mubr.bf16.mxu0 %v456
      %548 = vmatmul.mubr.bf16.gmra.mrb[0].mxu0 %v348
      %v549 = vpop.f32.mrb[0].mxu0
      %v550 = vadd.f32 0.0, %v549
      %v551 = vpop.f32.mrb[0].mxu0
      %v552 = vpop.f32.mrb[0].mxu0
      %v553 = vadd.f32 0.0, %v552
      %v554 = vpop.f32.mrb[0].mxu0
      %555 = vmatprep.mubr.bf16.mxu0 %v459
      %556 = vmatmul.mubr.bf16.gmra.mrb[0].mxu0 %v350
      %v557 = vpop.f32.mrb[0].mxu0
      %v558 = vadd.f32 0.0, %v557
      %v559 = vpop.f32.mrb[0].mxu0
      %v560 = vpop.f32.mrb[0].mxu0
      %v561 = vadd.f32 0.0, %v560
      %v562 = vpop.f32.mrb[0].mxu0
      %563 = vmatprep.mubr.bf16.mxu0 %v462
      %564 = vmatmul.mubr.bf16.gmra.mrb[0].mxu0 %v352
      %v565 = vpop.f32.mrb[0].mxu0
      %v566 = vadd.f32 0.0, %v565
      %v567 = vpop.f32.mrb[0].mxu0
      %v568 = vpop.f32.mrb[0].mxu0
      %v569 = vadd.f32 0.0, %v568
      %v570 = vpop.f32.mrb[0].mxu0
      %571 = vmatprep.mubr.bf16.mxu0 %v465
      %572 = vmatmul.mubr.bf16.gmra.mrb[0].mxu0 %v354
      %v573 = vpop.f32.mrb[0].mxu0
      %v574 = vadd.f32 0.0, %v573
      %v575 = vpop.f32.mrb[0].mxu0
      %v576 = vpop.f32.mrb[0].mxu0
      %v577 = vadd.f32 0.0, %v576
      %v578 = vpop.f32.mrb[0].mxu0
      %579 = vmatprep.mubr.bf16.mxu0 %v468
      %580 = vmatmul.mubr.bf16.gmra.mrb[0].mxu0 %v356
      %v581 = vpop.f32.mrb[0].mxu0
      %v582 = vadd.f32 0.0, %v581
      %v583 = vpop.f32.mrb[0].mxu0
      %v584 = vpop.f32.mrb[0].mxu0
      %v585 = vadd.f32 0.0, %v584
      %v586 = vpop.f32.mrb[0].mxu0
      %587 = vmatprep.mubr.bf16.mxu0 %v471
      %588 = vmatmul.mubr.bf16.gmra.mrb[0].mxu0 %v358
      %v589 = vpop.f32.mrb[0].mxu0
      %v590 = vadd.f32 0.0, %v589
      %v591 = vpop.f32.mrb[0].mxu0
      %v592 = vpop.f32.mrb[0].mxu0
      %v593 = vadd.f32 0.0, %v592
      %v594 = vpop.f32.mrb[0].mxu0
      %595 = vmatprep.mubr.bf16.mxu0 %v474
      %596 = vmatmul.mubr.bf16.gmra.mrb[0].mxu0 %v360
      %v597 = vpop.f32.mrb[0].mxu0
      %v598 = vadd.f32 0.0, %v597
      %v599 = vpop.f32.mrb[0].mxu0
      %v600 = vpop.f32.mrb[0].mxu0
      %v601 = vadd.f32 0.0, %v600
      %v602 = vpop.f32.mrb[0].mxu0
      %603 = vmatprep.mubr.bf16.mxu0 %v477
      %604 = vmatmul.mubr.bf16.gmra.mrb[0].mxu0 %v362
      %v605 = vpop.f32.mrb[0].mxu0
      %v606 = vadd.f32 0.0, %v605
      %v607 = vpop.f32.mrb[0].mxu0
      %v608 = vpop.f32.mrb[0].mxu0
      %v609 = vadd.f32 0.0, %v608
      %v610 = vpop.f32.mrb[0].mxu0
      %611 = vmatprep.mubr.bf16.mxu0 %v480
      %612 = vmatmul.mubr.bf16.gmra.mrb[0].mxu0 %v364
      %v613 = vpop.f32.mrb[0].mxu0
      %v614 = vadd.f32 0.0, %v613
      %v615 = vpop.f32.mrb[0].mxu0
      %v616 = vpop.f32.mrb[0].mxu0
      %v617 = vadd.f32 0.0, %v616
      %v618 = vpop.f32.mrb[0].mxu0
      %619 = vmatprep.mubr.bf16.mxu0 %v483
      %620 = vmatmul.mubr.bf16.gmra.mrb[0].mxu0 %v366
      %v621 = vpop.f32.mrb[0].mxu0
      %v622 = vadd.f32 0.0, %v621
      %v623 = vpop.f32.mrb[0].mxu0
      %v624 = vpop.f32.mrb[0].mxu0
      %v625 = vadd.f32 0.0, %v624
      %v626 = vpop.f32.mrb[0].mxu0
      %627 = vmatprep.mubr.bf16.mxu0 %v486
      %628 = vmatmul.mubr.bf16.gmra.mrb[0].mxu0 %v368
      %v629 = vpop.f32.mrb[0].mxu0
      %v630 = vadd.f32 0.0, %v629
      %v631 = vpop.f32.mrb[0].mxu0
      %v632 = vpop.f32.mrb[0].mxu0
      %v633 = vadd.f32 0.0, %v632
      %v634 = vpop.f32.mrb[0].mxu0
      %635 = vmatprep.mubr.bf16.mxu0 %v489
      %636 = vmatmul.mubr.bf16.gmra.mrb[0].mxu0 %v370
      %v637 = vpop.f32.mrb[0].mxu0
      %v638 = vadd.f32 0.0, %v637
      %v639 = vpop.f32.mrb[0].mxu0
      %v640 = vpop.f32.mrb[0].mxu0
      %v641 = vadd.f32 0.0, %v640
      %v642 = vpop.f32.mrb[0].mxu0
      %643 = vmatprep.mubr.bf16.mxu0 %v492
      %644 = vmatmul.mubr.bf16.gmra.mrb[0].mxu0 %v372
      %v645 = vpop.f32.mrb[0].mxu0
      %v646 = vadd.f32 0.0, %v645
      %v647 = vpop.f32.mrb[0].mxu0
      %v648 = vpop.f32.mrb[0].mxu0
      %v649 = vadd.f32 0.0, %v648
      %v650 = vpop.f32.mrb[0].mxu0
      %651 = vmatprep.mubr.bf16.mxu0 %v495
      %652 = vmatmul.mubr.bf16.gmra.mrb[0].mxu0 %v374
      %v653 = vpop.f32.mrb[0].mxu0
      %v654 = vadd.f32 0.0, %v653
      %v655 = vpop.f32.mrb[0].mxu0
      %v656 = vpop.f32.mrb[0].mxu0
      %v657 = vadd.f32 0.0, %v656
      %v658 = vpop.f32.mrb[0].mxu0
      %659 = vmatprep.mubr.bf16.mxu0 %v498
      %660 = vmatmul.mubr.bf16.gmra.mrb[0].mxu0 %v376
      %v661 = vpop.f32.mrb[0].mxu0
      %v662 = vadd.f32 0.0, %v661
      %v663 = vpop.f32.mrb[0].mxu0
      %v664 = vpop.f32.mrb[0].mxu0
      %v665 = vadd.f32 0.0, %v664
      %v666 = vpop.f32.mrb[0].mxu0
      %667 = vdwg.mxu0
      %v668 = vld [vmem:[%s2] sm:$0x1]
      %v669 = vld [vmem:[%s3] sm:$0x1]
      %vm670 = vcmask 261120
      %v671 = vsel %vm670, %v542, 0.0
      %v672 = vsel %vm670, %v545, 0.0
      %v673 = vadd.f32 %v671, %v672
      %v674 = vsel %vm670, %v550, 0.0
      %v675 = vadd.f32 %v673, %v674
      %v676 = vsel %vm670, %v553, 0.0
      %v677 = vadd.f32 %v675, %v676
      %v678 = vsel %vm670, %v558, 0.0
      %v679 = vadd.f32 %v677, %v678
      %v680 = vsel %vm670, %v561, 0.0
      %v681 = vadd.f32 %v679, %v680
      %v682 = vsel %vm670, %v566, 0.0
      %v683 = vadd.f32 %v681, %v682
      %v684 = vsel %vm670, %v569, 0.0
      %v685 = vadd.f32 %v683, %v684
      %v686 = vsel %vm670, %v574, 0.0
      %v687 = vadd.f32 %v685, %v686
      %v688 = vsel %vm670, %v577, 0.0
      %v689 = vadd.f32 %v687, %v688
      %v690 = vsel %vm670, %v582, 0.0
      %v691 = vadd.f32 %v689, %v690
      %v692 = vsel %vm670, %v585, 0.0
      %v693 = vadd.f32 %v691, %v692
      %v694 = vsel %vm670, %v590, 0.0
      %v695 = vadd.f32 %v693, %v694
      %v696 = vsel %vm670, %v593, 0.0
      %v697 = vadd.f32 %v695, %v696
      %v698 = vsel %vm670, %v598, 0.0
      %v699 = vadd.f32 %v697, %v698
      %v700 = vsel %vm670, %v601, 0.0
      %v701 = vadd.f32 %v699, %v700
      %v702 = vsel %vm670, %v606, 0.0
      %v703 = vadd.f32 %v701, %v702
      %v704 = vsel %vm670, %v609, 0.0
      %v705 = vadd.f32 %v703, %v704
      %v706 = vsel %vm670, %v614, 0.0
      %v707 = vadd.f32 %v705, %v706
      %v708 = vsel %vm670, %v617, 0.0
      %v709 = vadd.f32 %v707, %v708
      %v710 = vsel %vm670, %v622, 0.0
      %v711 = vadd.f32 %v709, %v710
      %v712 = vsel %vm670, %v625, 0.0
      %v713 = vadd.f32 %v711, %v712
      %v714 = vsel %vm670, %v630, 0.0
      %v715 = vadd.f32 %v713, %v714
      %v716 = vsel %vm670, %v633, 0.0
      %v717 = vadd.f32 %v715, %v716
      %v718 = vsel %vm670, %v638, 0.0
      %v719 = vadd.f32 %v717, %v718
      %v720 = vsel %vm670, %v641, 0.0
      %v721 = vadd.f32 %v719, %v720
      %v722 = vsel %vm670, %v646, 0.0
      %v723 = vadd.f32 %v721, %v722
      %v724 = vsel %vm670, %v649, 0.0
      %v725 = vadd.f32 %v723, %v724
      %v726 = vsel %vm670, %v654, 0.0
      %v727 = vadd.f32 %v725, %v726
      %v728 = vsel %vm670, %v657, 0.0
      %v729 = vadd.f32 %v727, %v728
      %v730 = vsel %vm670, %v662, 0.0
      %v731 = vadd.f32 %v729, %v730
      %v732 = vsel %vm670, %v665, 0.0
      %v733 = vadd.f32 %v731, %v732
      %v734 = vrot.slane %v733, 4
      %v735 = vadd.f32 %v733, %v734
      %v736 = vrot.slane %v735, 2
      %v737 = vadd.f32 %v735, %v736
      %v738 = vrot.slane %v737, 1
      %v739 = vadd.f32 %v737, %v738
      %v740 = vmul.f32 %v739, 0.00390625
      %v741 = vsub.f32 %v542, %v740
      %v742 = vsub.f32 %v545, %v740
      %v743 = vsub.f32 %v550, %v740
      %v744 = vsub.f32 %v553, %v740
      %v745 = vsub.f32 %v558, %v740
      %v746 = vsub.f32 %v561, %v740
      %v747 = vsub.f32 %v566, %v740
      %v748 = vsub.f32 %v569, %v740
      %v749 = vsub.f32 %v574, %v740
      %v750 = vsub.f32 %v577, %v740
      %v751 = vsub.f32 %v582, %v740
      %v752 = vsub.f32 %v585, %v740
      %v753 = vsub.f32 %v590, %v740
      %v754 = vsub.f32 %v593, %v740
      %v755 = vsub.f32 %v598, %v740
      %v756 = vsub.f32 %v601, %v740
      %v757 = vsub.f32 %v606, %v740
      %v758 = vsub.f32 %v609, %v740
      %v759 = vsub.f32 %v614, %v740
      %v760 = vsub.f32 %v617, %v740
      %v761 = vsub.f32 %v622, %v740
      %v762 = vsub.f32 %v625, %v740
      %v763 = vsub.f32 %v630, %v740
      %v764 = vsub.f32 %v633, %v740
      %v765 = vsub.f32 %v638, %v740
      %v766 = vsub.f32 %v641, %v740
      %v767 = vsub.f32 %v646, %v740
      %v768 = vsub.f32 %v649, %v740
      %v769 = vsub.f32 %v654, %v740
      %v770 = vsub.f32 %v657, %v740
      %v771 = vsub.f32 %v662, %v740
      %v772 = vsub.f32 %v665, %v740
      %v773 = vmul.f32 %v741, %v741
      %v774 = vmul.f32 %v742, %v742
      %v775 = vmul.f32 %v743, %v743
      %v776 = vmul.f32 %v744, %v744
      %v777 = vmul.f32 %v745, %v745
      %v778 = vmul.f32 %v746, %v746
      %v779 = vmul.f32 %v747, %v747
      %v780 = vmul.f32 %v748, %v748
      %v781 = vmul.f32 %v749, %v749
      %v782 = vmul.f32 %v750, %v750
      %v783 = vmul.f32 %v751, %v751
      %v784 = vmul.f32 %v752, %v752
      %v785 = vmul.f32 %v753, %v753
      %v786 = vmul.f32 %v754, %v754
      %v787 = vmul.f32 %v755, %v755
      %v788 = vmul.f32 %v756, %v756
      %v789 = vmul.f32 %v757, %v757
      %v790 = vmul.f32 %v758, %v758
      %v791 = vmul.f32 %v759, %v759
      %v792 = vmul.f32 %v760, %v760
      %v793 = vmul.f32 %v761, %v761
      %v794 = vmul.f32 %v762, %v762
      %v795 = vmul.f32 %v763, %v763
      %v796 = vmul.f32 %v764, %v764
      %v797 = vmul.f32 %v765, %v765
      %v798 = vmul.f32 %v766, %v766
      %v799 = vmul.f32 %v767, %v767
      %v800 = vmul.f32 %v768, %v768
      %v801 = vmul.f32 %v769, %v769
      %v802 = vmul.f32 %v770, %v770
      %v803 = vmul.f32 %v771, %v771
      %v804 = vmul.f32 %v772, %v772
      %v805 = vsel %vm670, %v773, 0.0
      %v806 = vsel %vm670, %v774, 0.0
      %v807 = vadd.f32 %v805, %v806
      %v808 = vsel %vm670, %v775, 0.0
      %v809 = vadd.f32 %v807, %v808
      %v810 = vsel %vm670, %v776, 0.0
      %v811 = vadd.f32 %v809, %v810
      %v812 = vsel %vm670, %v777, 0.0
      %v813 = vadd.f32 %v811, %v812
      %v814 = vsel %vm670, %v778, 0.0
      %v815 = vadd.f32 %v813, %v814
      %v816 = vsel %vm670, %v779, 0.0
      %v817 = vadd.f32 %v815, %v816
      %v818 = vsel %vm670, %v780, 0.0
      %v819 = vadd.f32 %v817, %v818
      %v820 = vsel %vm670, %v781, 0.0
      %v821 = vadd.f32 %v819, %v820
      %v822 = vsel %vm670, %v782, 0.0
      %v823 = vadd.f32 %v821, %v822
      %v824 = vsel %vm670, %v783, 0.0
      %v825 = vadd.f32 %v823, %v824
      %v826 = vsel %vm670, %v784, 0.0
      %v827 = vadd.f32 %v825, %v826
      %v828 = vsel %vm670, %v785, 0.0
      %v829 = vadd.f32 %v827, %v828
      %v830 = vsel %vm670, %v786, 0.0
      %v831 = vadd.f32 %v829, %v830
      %v832 = vsel %vm670, %v787, 0.0
      %v833 = vadd.f32 %v831, %v832
      %v834 = vsel %vm670, %v788, 0.0
      %v835 = vadd.f32 %v833, %v834
      %v836 = vsel %vm670, %v789, 0.0
      %v837 = vadd.f32 %v835, %v836
      %v838 = vsel %vm670, %v790, 0.0
      %v839 = vadd.f32 %v837, %v838
      %v840 = vsel %vm670, %v791, 0.0
      %v841 = vadd.f32 %v839, %v840
      %v842 = vsel %vm670, %v792, 0.0
      %v843 = vadd.f32 %v841, %v842
      %v844 = vsel %vm670, %v793, 0.0
      %v845 = vadd.f32 %v843, %v844
      %v846 = vsel %vm670, %v794, 0.0
      %v847 = vadd.f32 %v845, %v846
      %v848 = vsel %vm670, %v795, 0.0
      %v849 = vadd.f32 %v847, %v848
      %v850 = vsel %vm670, %v796, 0.0
      %v851 = vadd.f32 %v849, %v850
      %v852 = vsel %vm670, %v797, 0.0
      %v853 = vadd.f32 %v851, %v852
      %v854 = vsel %vm670, %v798, 0.0
      %v855 = vadd.f32 %v853, %v854
      %v856 = vsel %vm670, %v799, 0.0
      %v857 = vadd.f32 %v855, %v856
      %v858 = vsel %vm670, %v800, 0.0
      %v859 = vadd.f32 %v857, %v858
      %v860 = vsel %vm670, %v801, 0.0
      %v861 = vadd.f32 %v859, %v860
      %v862 = vsel %vm670, %v802, 0.0
      %v863 = vadd.f32 %v861, %v862
      %v864 = vsel %vm670, %v803, 0.0
      %v865 = vadd.f32 %v863, %v864
      %v866 = vsel %vm670, %v804, 0.0
      %v867 = vadd.f32 %v865, %v866
      %v868 = vrot.slane %v867, 4
      %v869 = vadd.f32 %v867, %v868
      %v870 = vrot.slane %v869, 2
      %v871 = vadd.f32 %v869, %v870
      %v872 = vrot.slane %v871, 1
      %v873 = vadd.f32 %v871, %v872
      %v874 = vmul.f32 %v873, 0.00390625
      %v875 = vadd.f32 %v874, 1e-06
      %v876 = vrsqrt.pop %v875
      %v877 = vmul.f32 %v876, %v668
      %v878 = vlaneseq
      %v879 = vshrl.u32 %v878, 7
      %v880 = vsub.s32 0, %v879
      %v881 = vrot.slane %v877, %v880
      %v882 = vmul.f32 %v741, %v881
      %v883 = vmul.f32 %v742, %v881
      %v884 = vmul.f32 %v743, %v881
      %v885 = vmul.f32 %v744, %v881
      %v886 = vmul.f32 %v745, %v881
      %v887 = vmul.f32 %v746, %v881
      %v888 = vmul.f32 %v747, %v881
      %v889 = vmul.f32 %v748, %v881
      %v890 = vmul.f32 %v749, %v881
      %v891 = vmul.f32 %v750, %v881
      %v892 = vmul.f32 %v751, %v881
      %v893 = vmul.f32 %v752, %v881
      %v894 = vmul.f32 %v753, %v881
      %v895 = vmul.f32 %v754, %v881
      %v896 = vmul.f32 %v755, %v881
      %v897 = vmul.f32 %v756, %v881
      %v898 = vmul.f32 %v757, %v881
      %v899 = vmul.f32 %v758, %v881
      %v900 = vmul.f32 %v759, %v881
      %v901 = vmul.f32 %v760, %v881
      %v902 = vmul.f32 %v761, %v881
      %v903 = vmul.f32 %v762, %v881
      %v904 = vmul.f32 %v763, %v881
      %v905 = vmul.f32 %v764, %v881
      %v906 = vmul.f32 %v765, %v881
      %v907 = vmul.f32 %v766, %v881
      %v908 = vmul.f32 %v767, %v881
      %v909 = vmul.f32 %v768, %v881
      %v910 = vmul.f32 %v769, %v881
      %v911 = vmul.f32 %v770, %v881
      %v912 = vmul.f32 %v771, %v881
      %v913 = vmul.f32 %v772, %v881
      %v915 = vlaneseq
      %v916 = vshrl.u32 %v915, 7
      %v917 = vsub.s32 0, %v916
      %v918 = vrot.slane %v669, %v917
      %v920 = vadd.f32 %v882, %v918
      %v921 = vadd.f32 %v883, %v918
      %v922 = vadd.f32 %v884, %v918
      %v923 = vadd.f32 %v885, %v918
      %v924 = vadd.f32 %v886, %v918
      %v925 = vadd.f32 %v887, %v918
      %v926 = vadd.f32 %v888, %v918
      %v927 = vadd.f32 %v889, %v918
      %v928 = vadd.f32 %v890, %v918
      %v929 = vadd.f32 %v891, %v918
      %v930 = vadd.f32 %v892, %v918
      %v931 = vadd.f32 %v893, %v918
      %v932 = vadd.f32 %v894, %v918
      %v933 = vadd.f32 %v895, %v918
      %v934 = vadd.f32 %v896, %v918
      %v935 = vadd.f32 %v897, %v918
      %v936 = vadd.f32 %v898, %v918
      %v937 = vadd.f32 %v899, %v918
      %v938 = vadd.f32 %v900, %v918
      %v939 = vadd.f32 %v901, %v918
      %v940 = vadd.f32 %v902, %v918
      %v941 = vadd.f32 %v903, %v918
      %v942 = vadd.f32 %v904, %v918
      %v943 = vadd.f32 %v905, %v918
      %v944 = vadd.f32 %v906, %v918
      %v945 = vadd.f32 %v907, %v918
      %v946 = vadd.f32 %v908, %v918
      %v947 = vadd.f32 %v909, %v918
      %v948 = vadd.f32 %v910, %v918
      %v949 = vadd.f32 %v911, %v918
      %v950 = vadd.f32 %v912, %v918
      %v951 = vadd.f32 %v913, %v918
      %v952 = vmax.f32 %v920, 0.0
      %v953 = vmax.f32 %v921, 0.0
      %v954 = vmax.f32 %v922, 0.0
      %v955 = vmax.f32 %v923, 0.0
      %v956 = vmax.f32 %v924, 0.0
      %v957 = vmax.f32 %v925, 0.0
      %v958 = vmax.f32 %v926, 0.0
      %v959 = vmax.f32 %v927, 0.0
      %v960 = vmax.f32 %v928, 0.0
      %v961 = vmax.f32 %v929, 0.0
      %v962 = vmax.f32 %v930, 0.0
      %v963 = vmax.f32 %v931, 0.0
      %v964 = vmax.f32 %v932, 0.0
      %v965 = vmax.f32 %v933, 0.0
      %v966 = vmax.f32 %v934, 0.0
      %v967 = vmax.f32 %v935, 0.0
      %v968 = vmax.f32 %v936, 0.0
      %v969 = vmax.f32 %v937, 0.0
      %v970 = vmax.f32 %v938, 0.0
      %v971 = vmax.f32 %v939, 0.0
      %v972 = vmax.f32 %v940, 0.0
      %v973 = vmax.f32 %v941, 0.0
      %v974 = vmax.f32 %v942, 0.0
      %v975 = vmax.f32 %v943, 0.0
      %v976 = vmax.f32 %v944, 0.0
      %v977 = vmax.f32 %v945, 0.0
      %v978 = vmax.f32 %v946, 0.0
      %v979 = vmax.f32 %v947, 0.0
      %v980 = vmax.f32 %v948, 0.0
      %v981 = vmax.f32 %v949, 0.0
      %v982 = vmax.f32 %v950, 0.0
      %v983 = vmax.f32 %v951, 0.0
      %984 = vst.msk [vmem:[%s197] sm:$0xff] %vm670, %v952
      %985 = vst.msk [vmem:[%s197 + $0x8] sm:$0xff] %vm670, %v953
      %986 = vst.msk [vmem:[%s197 + $0x10] sm:$0xff] %vm670, %v954
      %987 = vst.msk [vmem:[%s197 + $0x18] sm:$0xff] %vm670, %v955
      %988 = vst.msk [vmem:[%s197 + $0x20] sm:$0xff] %vm670, %v956
      %989 = vst.msk [vmem:[%s197 + $0x28] sm:$0xff] %vm670, %v957
      %990 = vst.msk [vmem:[%s197 + $0x30] sm:$0xff] %vm670, %v958
      %991 = vst.msk [vmem:[%s197 + $0x38] sm:$0xff] %vm670, %v959
      %992 = vst.msk [vmem:[%s197 + $0x40] sm:$0xff] %vm670, %v960
      %993 = vst.msk [vmem:[%s197 + $0x48] sm:$0xff] %vm670, %v961
      %994 = vst.msk [vmem:[%s197 + $0x50] sm:$0xff] %vm670, %v962
      %995 = vst.msk [vmem:[%s197 + $0x58] sm:$0xff] %vm670, %v963
      %996 = vst.msk [vmem:[%s197 + $0x60] sm:$0xff] %vm670, %v964
      %997 = vst.msk [vmem:[%s197 + $0x68] sm:$0xff] %vm670, %v965
      %998 = vst.msk [vmem:[%s197 + $0x70] sm:$0xff] %vm670, %v966
      %999 = vst.msk [vmem:[%s197 + $0x78] sm:$0xff] %vm670, %v967
      %1000 = vst.msk [vmem:[%s197 + $0x80] sm:$0xff] %vm670, %v968
      %1001 = vst.msk [vmem:[%s197 + $0x88] sm:$0xff] %vm670, %v969
      %1002 = vst.msk [vmem:[%s197 + $0x90] sm:$0xff] %vm670, %v970
      %1003 = vst.msk [vmem:[%s197 + $0x98] sm:$0xff] %vm670, %v971
      %1004 = vst.msk [vmem:[%s197 + $0xa0] sm:$0xff] %vm670, %v972
      %1005 = vst.msk [vmem:[%s197 + $0xa8] sm:$0xff] %vm670, %v973
      %1006 = vst.msk [vmem:[%s197 + $0xb0] sm:$0xff] %vm670, %v974
      %1007 = vst.msk [vmem:[%s197 + $0xb8] sm:$0xff] %vm670, %v975
      %1008 = vst.msk [vmem:[%s197 + $0xc0] sm:$0xff] %vm670, %v976
      %1009 = vst.msk [vmem:[%s197 + $0xc8] sm:$0xff] %vm670, %v977
      %1010 = vst.msk [vmem:[%s197 + $0xd0] sm:$0xff] %vm670, %v978
      %1011 = vst.msk [vmem:[%s197 + $0xd8] sm:$0xff] %vm670, %v979
      %1012 = vst.msk [vmem:[%s197 + $0xe0] sm:$0xff] %vm670, %v980
      %1013 = vst.msk [vmem:[%s197 + $0xe8] sm:$0xff] %vm670, %v981
      %1014 = vst.msk [vmem:[%s197 + $0xf0] sm:$0xff] %vm670, %v982
      %1015 = vst.msk [vmem:[%s197 + $0xf8] sm:$0xff] %vm670, %v983
      %p1016 = scmp.lt.s32.totalorder %s15, 1
      %s1017 = scalar_select %p1016, %s15, 1
      %s1018 = smul.addr %s1017, 32
      %s1019 = smul.addr %s1018, 8
      %s1020 = scalar_lea.vmem %s4, %s1019
      // Predicated region
      $region37: #{tpu_custom_call.1} parent=35 // pred_check
        %p1021 = pneg %p122
      $region38: #{tpu_custom_call.1} parent=35 // pred_check_branch
        %1023 = sbr.rel (%p1021) target = $region40
      $region39: #{tpu_custom_call.1} parent=35 // pred_region
        _
      $region40: #{tpu_custom_call.1} parent=35 // pred_fallthru
        _
    $region36: #{tpu_custom_call.1} parent=5 // pred_fallthru
      _
    %p1024 = scmp.le.s32.totalorder 2, %s10
    // Predicated region
    $region41: #{tpu_custom_call.1} parent=5 // pred_check
      %p1025 = pneg %p1024
    $region42: #{tpu_custom_call.1} parent=5 // pred_check_branch
      %1027 = sbr.rel (%p1025) target = $region44
    $region43: #{tpu_custom_call.1} parent=5 // pred_region
      %s1028 = ssub.s32 %s10, 2
      // Predicated region
      $region45: #{tpu_custom_call.1} parent=43 // pred_check
        %p1029 = pneg %p128
      $region46: #{tpu_custom_call.1} parent=43 // pred_check_branch
        %1031 = sbr.rel (%p1029) target = $region48
      $region47: #{tpu_custom_call.1} parent=43 // pred_region
        %p1032 = scmp.lt.s32.totalorder %s16, 1
        %s1033 = scalar_select %p1032, %s16, 1
        %s1034 = smul.addr %s1033, 32
        %s1035 = smul.addr %s1034, 8
        %s1036 = scalar_lea.vmem %s4, %s1035
      $region48: #{tpu_custom_call.1} parent=43 // pred_fallthru
        _
    $region44: #{tpu_custom_call.1} parent=5 // pred_fallthru
      _
  $region6: #{tpu_custom_call.1} parent=0 // loop_footer
    %s14 = sadd.s32 1, %s10
  $region7: #{tpu_custom_call.1} parent=0 // loop_footer_branch
    %9 = sbr.rel target = $region3
  $region8: #{tpu_custom_call.1} parent=0 // loop_exit
    _

</llo_original>
